<compile_context>
chip_gen: v7x
topology: tpu7x:2x2x1
jax: 0.10.0
libtpu: 0.0.40
codegen_flags: <defaults>
</compile_context>

<pallas_src>
import jax
import jax.numpy as jnp
from jax.experimental import pallas as pl
from jax.experimental.pallas import tpu as pltpu


def _cdiv(a, b):
    return -(-a // b)


def _round_up(x, m):
    return _cdiv(x, m) * m


def _get_chip_budget():
    """Returns (tile_budget_bytes, vmem_limit_bytes, num_tensorcores).

    tile_budget_bytes is the total budget for all double-buffered tiles of one
    grid step.  Heuristic: >=100 MiB physical VMEM -> v5e/v6e (1 TC, 128 MiB);
    otherwise assume v7x (2 TCs, 64 MiB/TC).
    """
    vmem = None
    try:
        info = pltpu.get_tpu_info()
        vmem = getattr(info, "vmem_capacity_bytes", None)
    except Exception:
        vmem = None
    if not vmem:
        vmem = 64 * 1024 * 1024  # conservative default (v7x-sized)
    if vmem >= 100 * 1024 * 1024:
        # v5e / v6e: 128 MiB physical VMEM, single TensorCore.
        return 56 * 1024 * 1024, 96 * 1024 * 1024, 1
    # v7x: 64 MiB per TC (32 MiB scoped default), two TensorCores.
    return 28 * 1024 * 1024, 48 * 1024 * 1024, 2


def _choose_block_b(B, S, F, x_itemsize, out_itemsize):
    """Pick the per-step batch tile TB (multiple of 8) and the VMEM limit."""
    tile_budget, vmem_limit, num_tc = _get_chip_budget()

    s_sub = _round_up(S, 8)      # sublane padding of the (S, F) input tile
    f_lane = _round_up(F, 128)   # lane padding of the (S, F) input tile
    s_lane = _round_up(S, 128)   # lane padding of the (TB, S) output tile

    in_row = s_sub * f_lane * x_itemsize          # input bytes / batch row
    out_row = 2 * s_lane * out_itemsize           # output bytes / batch row (2 slabs)
    scratch_row = 4 * s_lane * 4                  # f32 xm/lin/per intermediates
    per_row = 2 * in_row + 2 * out_row + scratch_row   # double-buffered in + out

    params_bytes = 2 * 8 * s_lane * 4             # resident (4, S) f32 block, 2 bufs
    budget = max(tile_budget - params_bytes, 1 << 20)

    tb_vmem = max(8, (budget // per_row) // 8 * 8)

    if num_tc > 1:
        # Keep at least one grid step per TensorCore when B allows it.
        tb_grid = max(8, _round_up(_cdiv(B, num_tc), 8))
        tb = min(tb_vmem, tb_grid)
    else:
        # Single TC: grid steps are a serial loop; let VMEM set the tile.
        tb = tb_vmem
    return max(8, tb), vmem_limit


def _t2v_kernel_slab(x_ref, params_ref, out_ref):
    # x_ref:      (TB, S, F)
    # params_ref: (4, S)   packed [w_lin, b_lin, w_per, b_per] (resident)
    # out_ref:    (2, TB, S)  [0] = linear, [1] = periodic
    inv_f = 1.0 / float(x_ref.shape[-1])
    # Fold the upcast into the reduction: no full f32 copy of the input tile.
    xm = jnp.sum(x_ref[...], axis=-1, dtype=jnp.float32) * inv_f   # (TB, S)

    p = params_ref[...].astype(jnp.float32)                         # (4, S)
    out_ref[0, :, :] = (p[0:1, :] * xm + p[1:2, :]).astype(out_ref.dtype)
    out_ref[1, :, :] = jnp.sin(xm * p[2:3, :] + p[3:4, :]).astype(out_ref.dtype)


def _t2v_kernel_lanes(x_ref, params_ref, out_ref):
    # Lane-dense output variant: out_ref is (2, S, TB) so the store lane axis
    # is the (>=128, multiple-of-128) batch tile instead of a small S.
    inv_f = 1.0 / float(x_ref.shape[-1])
    xm = jnp.sum(x_ref[...], axis=-1, dtype=jnp.float32) * inv_f   # (TB, S)
    xm_t = xm.T                                                     # (S, TB), one XLU transpose
    p_t = params_ref[...].astype(jnp.float32).T                     # (S, 4), tiny
    out_ref[0, :, :] = (p_t[:, 0:1] * xm_t + p_t[:, 1:2]).astype(out_ref.dtype)
    out_ref[1, :, :] = jnp.sin(xm_t * p_t[:, 2:3] + p_t[:, 3:4]).astype(out_ref.dtype)


def time2vector(x, weights_linear, bias_linear, weights_periodic, bias_periodic):
    """x: (B, S, F). Params: (S,). Returns (B, S, 2), matching the PyTorch module."""
    B, S, F = x.shape
    out_dtype = x.dtype

    tb, vmem_limit = _choose_block_b(
        B, S, F, jnp.dtype(x.dtype).itemsize, jnp.dtype(out_dtype).itemsize
    )

    # No batch padding: either a single full-batch block, or a multiple-of-8
    # tile with a masked partial tail block (no extra HBM pass over x).
    if tb >= B:
        tb = B
    num_blocks = _cdiv(B, tb)

    # Lane-dense output layout when S is not a multiple of 128 and the batch
    # tile is big enough to be the lane axis (must be a multiple of 128 or the
    # full batch so the BlockSpec lane constraint holds).
    transpose_out = False
    if S % 128 != 0 and tb >= 128:
        if tb == B:
            transpose_out = True
        else:
            tb = (tb // 128) * 128
            num_blocks = _cdiv(B, tb)
            transpose_out = True

    # Pack the 4 per-seq parameter vectors into one (4, S) array -> one
    # BlockSpec, one DMA descriptor, fetched once (constant index_map).
    params = jnp.stack(
        [weights_linear, bias_linear, weights_periodic, bias_periodic], axis=0
    ).astype(jnp.float32)

    if transpose_out:
        kernel = _t2v_kernel_lanes
        out_shape = jax.ShapeDtypeStruct((2, S, B), out_dtype)
        out_spec = pl.BlockSpec((2, S, tb), lambda b: (0, 0, b))
    else:
        kernel = _t2v_kernel_slab
        out_shape = jax.ShapeDtypeStruct((2, B, S), out_dtype)
        out_spec = pl.BlockSpec((2, tb, S), lambda b: (0, b, 0))

    out = pl.pallas_call(
        kernel,
        out_shape=out_shape,
        grid_spec=pltpu.PrefetchScalarGridSpec(
            num_scalar_prefetch=0,
            grid=(num_blocks,),
            in_specs=[
                pl.BlockSpec((tb, S, F), lambda b: (b, 0, 0)),
                # Constant block index -> Pallas only DMAs this tiny block once.
                pl.BlockSpec((4, S), lambda b: (0, 0)),
            ],
            out_specs=out_spec,
        ),
        compiler_params=pltpu.CompilerParams(
            dimension_semantics=("parallel",),
            vmem_limit_bytes=vmem_limit,
        ),
    )(x, params)

    if transpose_out:
        # (2, S, B) -> (B, S, 2)
        return jnp.transpose(out, (2, 1, 0))
    # (2, B, S) -> (B, S, 2)
    return jnp.moveaxis(out, 0, -1)


if __name__ == "__main__":
    key = jax.random.PRNGKey(0)
    B, S, F = 2, 8, 16

    kx, k1, k2, k3, k4 = jax.random.split(key, 5)
    x = jax.random.normal(kx, (B, S, F), dtype=jnp.float32)

    # nn.init.uniform_ -> U[0, 1); deterministic synthetic params.
    weights_linear = jax.random.uniform(k1, (S,), dtype=jnp.float32)
    bias_linear = jax.random.uniform(k2, (S,), dtype=jnp.float32)
    weights_periodic = jax.random.uniform(k3, (S,), dtype=jnp.float32)
    bias_periodic = jax.random.uniform(k4, (S,), dtype=jnp.float32)

    out = time2vector(x, weights_linear, bias_linear,
                      weights_periodic, bias_periodic)
    out = jax.block_until_ready(out)

    # Reference check in plain JAX (same semantics as the PyTorch forward).
    xm = jnp.mean(x, axis=-1)
    ref_lin = weights_linear * xm + bias_linear
    ref_per = jnp.sin(xm * weights_periodic + bias_periodic)
    ref = jnp.stack([ref_lin, ref_per], axis=-1)
    assert out.shape == (B, S, 2)
    assert jnp.allclose(out, ref, atol=1e-5, rtol=1e-5)

    print("KERNEL_OK")
</pallas_src>

<mosaic_0001>
module attributes {stable_mosaic.version = 11 : i64} {
  func.func @_t2v_kernel_slab(%arg0: i32, %arg1: memref<2x8x16xf32, #tpu.memory_space<vmem>>, %arg2: memref<4x8xf32, #tpu.memory_space<vmem>>, %arg3: memref<2x2x8xf32, #tpu.memory_space<vmem>>) attributes {dimension_semantics = [#tpu.dimension_semantics<parallel>], iteration_bounds = array<i64: 1>, scalar_prefetch = 0 : i64, scratch_operands = 0 : i64, tpu.core_type = #tpu.core_type<tc>, window_params = [{transform_indices = @transform_0, window_bounds = array<i64: 2, 8, 16>}, {pipeline_mode = #tpu.pipeline_mode<synchronous>, transform_indices = @transform_1, window_bounds = array<i64: 4, 8>}, {transform_indices = @transform_2, window_bounds = array<i64: 2, 2, 8>}]} {
    %c0 = arith.constant 0 : index
    %c0_0 = arith.constant 0 : index
    %c0_1 = arith.constant 0 : index
    %0 = vector.load %arg1[%c0, %c0_0, %c0_1] : memref<2x8x16xf32, #tpu.memory_space<vmem>>, vector<2x8x16xf32>
    %cst = arith.constant dense<0.000000e+00> : vector<2x8xf32>
    %1 = vector.multi_reduction <add>, %0, %cst [2] : vector<2x8x16xf32> to vector<2x8xf32>
    %cst_2 = arith.constant 6.250000e-02 : f32
    %2 = vector.broadcast %cst_2 : f32 to vector<2x8xf32>
    %3 = arith.mulf %1, %2 : vector<2x8xf32>
    %c0_3 = arith.constant 0 : index
    %c0_4 = arith.constant 0 : index
    %4 = vector.load %arg2[%c0_3, %c0_4] : memref<4x8xf32, #tpu.memory_space<vmem>>, vector<4x8xf32>
    %5 = vector.extract_strided_slice %4 {offsets = [0, 0], sizes = [1, 8], strides = [1, 1]} : vector<4x8xf32> to vector<1x8xf32>
    %6 = vector.broadcast %5 : vector<1x8xf32> to vector<2x8xf32>
    %7 = arith.mulf %6, %3 : vector<2x8xf32>
    %8 = vector.extract_strided_slice %4 {offsets = [1, 0], sizes = [1, 8], strides = [1, 1]} : vector<4x8xf32> to vector<1x8xf32>
    %9 = vector.broadcast %8 : vector<1x8xf32> to vector<2x8xf32>
    %10 = arith.addf %7, %9 : vector<2x8xf32>
    %c0_5 = arith.constant 0 : index
    %c0_6 = arith.constant 0 : index
    %c0_7 = arith.constant 0 : index
    %11 = vector.load %arg3[%c0_5, %c0_6, %c0_7] : memref<2x2x8xf32, #tpu.memory_space<vmem>>, vector<1x2x8xf32>
    %12 = vector.shape_cast %11 : vector<1x2x8xf32> to vector<2x8xf32>
    %13 = vector.shape_cast %10 : vector<2x8xf32> to vector<1x2x8xf32>
    tpu.vector_store %arg3[%c0_5, %c0_6, %c0_7], %13 {strides = array<i32>} : memref<2x2x8xf32, #tpu.memory_space<vmem>>, vector<1x2x8xf32>,
    %14 = vector.extract_strided_slice %4 {offsets = [2, 0], sizes = [1, 8], strides = [1, 1]} : vector<4x8xf32> to vector<1x8xf32>
    %15 = vector.broadcast %14 : vector<1x8xf32> to vector<2x8xf32>
    %16 = arith.mulf %3, %15 : vector<2x8xf32>
    %17 = vector.extract_strided_slice %4 {offsets = [3, 0], sizes = [1, 8], strides = [1, 1]} : vector<4x8xf32> to vector<1x8xf32>
    %18 = vector.broadcast %17 : vector<1x8xf32> to vector<2x8xf32>
    %19 = arith.addf %16, %18 : vector<2x8xf32>
    %20 = math.sin %19 : vector<2x8xf32>
    %c1 = arith.constant 1 : index
    %c0_8 = arith.constant 0 : index
    %c0_9 = arith.constant 0 : index
    %21 = vector.load %arg3[%c1, %c0_8, %c0_9] : memref<2x2x8xf32, #tpu.memory_space<vmem>>, vector<1x2x8xf32>
    %22 = vector.shape_cast %21 : vector<1x2x8xf32> to vector<2x8xf32>
    %23 = vector.shape_cast %20 : vector<2x8xf32> to vector<1x2x8xf32>
    tpu.vector_store %arg3[%c1, %c0_8, %c0_9], %23 {strides = array<i32>} : memref<2x2x8xf32, #tpu.memory_space<vmem>>, vector<1x2x8xf32>,
    return
  }
  func.func @transform_0(%arg0: i32) -> (i32, i32, i32) {
    %c0_i32 = arith.constant 0 : i32
    %c0_i32_0 = arith.constant 0 : i32
    %c0_i32_1 = arith.constant 0 : i32
    return %arg0, %c0_i32, %c0_i32_0 : i32, i32, i32
  }
  func.func @transform_1(%arg0: i32) -> (i32, i32) {
    %c0_i32 = arith.constant 0 : i32
    %c0_i32_0 = arith.constant 0 : i32
    %c0_i32_1 = arith.constant 0 : i32
    return %c0_i32, %c0_i32_0 : i32, i32
  }
  func.func @transform_2(%arg0: i32) -> (i32, i32, i32) {
    %c0_i32 = arith.constant 0 : i32
    %c0_i32_0 = arith.constant 0 : i32
    %c0_i32_1 = arith.constant 0 : i32
    return %c0_i32, %arg0, %c0_i32_0 : i32, i32, i32
  }
}

</mosaic_0001>

<llo_original>
// kernel: tpu_custom_call.1
$region0: #{tpu_custom_call.1}
  #allocation0 [shape = 'u32[]', space=smem, size = 0x4, offset = 0x4, fixed_abs, tag = 'smem constant byte address 0x4 - core index']
  #allocation1 [shape = 'u32[144,128]{1,0:T(1,128)}', space=vmem, size = 0x12000, scoped, tag = 'internal scratch']
  %s0 = inlined_call_operand.hbm [shape: f32[2,8,16], index: 0, kind: input, shape index: {}]
  %s1 = inlined_call_operand.hbm [shape: f32[4,8], index: 1, kind: input, shape index: {}]
  %s2 = inlined_call_operand.hbm [shape: f32[2,2,8], index: 2, kind: output, shape index: {}]
  %s3 = sld [smem:[#allocation0]]
  $region26: #{tpu_custom_call.1} parent=0
    _
  %s5 = ssub.s32 1, %s3
  %s6 = scalar_select 0, %s5, %s3
  $region1: #{tpu_custom_call.1} parent=0
    #allocation2 [shape = 'u8[8192]{0}', space=vmem, size = 0x2000, scoped, tag = 'input window, operand 0, single buffered']
    #allocation3 [shape = 's32[1]{0}', space=sflag, size = 0x4, scoped, tag = 'scoped memory for tpu_custom_call.1']
    #allocation4 [shape = 's32[1]{0}', space=sflag, size = 0x4, scoped, tag = 'scoped memory for tpu_custom_call.1']
    #allocation5 [shape = 'u8[2048]{0}', space=vmem, size = 0x800, scoped, tag = 'input window, operand 1, single buffered']
    #allocation6 [shape = 's32[1]{0}', space=sflag, size = 0x4, scoped, tag = 'scoped memory for tpu_custom_call.1']
    #allocation7 [shape = 'u8[2048]{0}', space=vmem, size = 0x800, scoped, tag = 'output window, operand 0, single buffered']
    %7 = vsyncpa [#allocation3], 0
    %8 = vsyncpa [#allocation6], 0
    %9 = vsyncpa [#allocation4], 0
    // Predicated region
    $region2: #{tpu_custom_call.1} parent=1 // pred_check
      _
    $region3: #{tpu_custom_call.1} parent=1 // pred_check_branch
      %11 = sbr.rel (0) target = $region5
    $region4: #{tpu_custom_call.1} parent=1 // pred_region
      %s13 = ssub.s32 256, 256
      %14 = vsyncadd [#allocation3], %s13
      %s15 = sshll.u32 [#allocation2], 4
      %s16 = int_to_ptr.vmem [resolvable:$true] %s15
      %21 = dma.hbm_to_vmem [thread:$0]  %s0, 256, %s16, [#allocation3], 128, 128, 8
    $region5: #{tpu_custom_call.1} parent=1 // pred_fallthru
      _
    // Predicated region
    $region6: #{tpu_custom_call.1} parent=1 // pred_check
      _
    $region7: #{tpu_custom_call.1} parent=1 // pred_check_branch
      %23 = sbr.rel (0) target = $region9
    $region8: #{tpu_custom_call.1} parent=1 // pred_region
      %s25 = ssub.s32 64, 64
      %26 = vsyncadd [#allocation6], %s25
      %s28 = sshll.u32 [#allocation5], 4
      %s29 = int_to_ptr.vmem [resolvable:$true] %s28
      %31 = dma.hbm_to_vmem [thread:$0]  %s1, 64, %s29, [#allocation6]
    $region9: #{tpu_custom_call.1} parent=1 // pred_fallthru
      _
    // Predicated region
    $region10: #{tpu_custom_call.1} parent=1 // pred_check
      _
    $region11: #{tpu_custom_call.1} parent=1 // pred_check_branch
      %33 = sbr.rel (0) target = $region13
    $region12: #{tpu_custom_call.1} parent=1 // pred_region
      %34 = dma.done [#allocation3], 256
    $region13: #{tpu_custom_call.1} parent=1 // pred_fallthru
      _
    // Predicated region
    $region14: #{tpu_custom_call.1} parent=1 // pred_check
      _
    $region15: #{tpu_custom_call.1} parent=1 // pred_check_branch
      %36 = sbr.rel (0) target = $region17
    $region16: #{tpu_custom_call.1} parent=1 // pred_region
      %37 = dma.done [#allocation6], 64
    $region17: #{tpu_custom_call.1} parent=1 // pred_fallthru
      _
    %v38 = vld [vmem:[#allocation2] sm:$0xff]
    %v39 = vld [vmem:[#allocation2 + $0x8] sm:$0xff]
    %vm40 = vcmask 130048
    %v41 = vsel %vm40, %v38, 0.0
    %42 = vadd.xlane.f32.xlu0 %v41
    %v43 = vpop.xlane.xlu0 %42
    %v44 = vsel %vm40, %v39, 0.0
    %45 = vadd.xlane.f32.xlu0 %v44
    %v46 = vpop.xlane.xlu0 %45
    %v47 = vmul.f32 %v43, 0.0625
    %v48 = vmul.f32 %v46, 0.0625
    %v49 = vld [vmem:[#allocation5] sm:$0xf]
    %v50 = vlaneseq
    %v51 = vshrl.u32 %v50, 7
    %v52 = vsub.s32 0, %v51
    %v53 = vrot.slane %v49, %v52
    %v56 = vlaneseq
    %v57 = vand.u32 %v56, 127
    %v58 = vlaneseq
    %v59 = vshrl.u32 %v58, 7
    %v60 = vsub.s32 %v57, %v59
    %v61 = vrot.slane %v47, %v60
    %v62 = vlaneseq
    %v63 = vshrl.u32 %v62, 7
    %v64 = vsub.s32 %v57, %v63
    %v65 = vrot.slane %v48, %v64
    %vm66 = vcmask 1041409
    %v67 = vsel %vm66, %v65, %v61
    %v69 = vmul.f32 %v53, %v67
    %v70 = vlaneseq
    %v71 = vshrl.u32 %v70, 7
    %v72 = vsub.s32 1, %v71
    %v73 = vrot.slane %v49, %v72
    %v74 = vadd.f32 %v69, %v73
    %vm75 = vcmask 58368
    %76 = vst.msk [vmem:[#allocation7] sm:$0x3] %vm75, %v74
    %v77 = vlaneseq
    %v78 = vshrl.u32 %v77, 7
    %v79 = vsub.s32 2, %v78
    %v80 = vrot.slane %v49, %v79
    %83 = vbcast.lane.b32.xlu0 %v80, 256
    %v84 = vpop.permute.xlu0 %83
    %v86 = vmul.f32 %v47, %v84
    %v87 = vmul.f32 %v48, %v84
    %v88 = vlaneseq
    %v89 = vshrl.u32 %v88, 7
    %v90 = vsub.s32 3, %v89
    %v91 = vrot.slane %v49, %v90
    %94 = vbcast.lane.b32.xlu0 %v91, 256
    %v95 = vpop.permute.xlu0 %94
    %v97 = vadd.f32 %v86, %v95
    %v98 = vadd.f32 %v87, %v95
    %v99 = vand.u32 2147483647, %v97
    %vm100 = vcmp.le.f32.partialorder %v99, 0.7853982
    %vm101 = vcmp.lt.s32.totalorder %v97, 0
    %v102 = vand.u32 %v97, 2139095040
    %v103 = vshrl.u32 %v102, 23
    %v104 = vsub.s32 %v103, 127
    %v105 = vand.u32 2147483647, %v97
    %v106 = vand.u32 %v105, 8388607
    %v107 = vor.u32 %v106, 8388608
    %v108 = vsub.s32 0, %v107
    %v109 = vadd.s32 %v104, 1
    %vm110 = vcmp.gt.s32.totalorder %v109, 0
    %v111 = vsel %vm110, %v109, 0
    %v112 = vshrl.u32 %v111, 5
    %v113 = vand.u32 %v111, 31
    %v114 = vsub.s32 32, %v113
    %v115 = vshrl.u32 683565275, %v114
    %v116 = vshll.u32 683565275, %v113
    %v117 = vshrl.u32 2475754826, %v114
    %v118 = vor.u32 %v116, %v117
    %v119 = vshll.u32 2475754826, %v113
    %v120 = vshrl.u32 2131351028, %v114
    %v121 = vor.u32 %v119, %v120
    %v122 = vshll.u32 2131351028, %v113
    %v123 = vshrl.u32 2102212464, %v114
    %v124 = vor.u32 %v122, %v123
    %v125 = vshll.u32 2102212464, %v113
    %v126 = vshrl.u32 920167782, %v114
    %v127 = vor.u32 %v125, %v126
    %v128 = vshll.u32 920167782, %v113
    %v129 = vshrl.u32 1326507024, %v114
    %v130 = vor.u32 %v128, %v129
    %vm131 = vcmp.lt.s32.totalorder %v112, 1
    %vm132 = vcmp.lt.s32.totalorder %v112, 2
    %vm133 = vcmp.lt.s32.totalorder %v112, 3
    %vm134 = vcmp.lt.s32.totalorder %v112, 4
    %v135 = vsel %vm131, %v115, %v118
    %v136 = vsel %vm134, %v124, 2102212464
    %v137 = vsel %vm133, %v121, %v136
    %v138 = vsel %vm132, %v135, %v137
    %v139 = vsel %vm131, %v118, %v121
    %v140 = vsel %vm134, %v127, 920167782
    %v141 = vsel %vm133, %v124, %v140
    %v142 = vsel %vm132, %v139, %v141
    %v143 = vsel %vm131, %v121, %v124
    %v144 = vsel %vm134, %v130, 1326507024
    %v145 = vsel %vm133, %v127, %v144
    %v146 = vsel %vm132, %v143, %v145
    %v147 = vshll.u32 %v107, 8
    %v148 = vmul.u32.u64.compose %v147, %v146
    %v149 = vextract.low.u32 %v148
    %v150 = vextract.high.u32 %v148
    %v151 = vmul.u32.u64.compose %v147, %v142
    %v152 = vextract.low.u32 %v151
    %v153 = vextract.high.u32 %v151
    %v154 = vmul.u32 %v147, %v138
    %v155 = vadd.s32 %v150, %v152
    %vm156 = vc.u32 %v150, %v152
    %v157 = vadd.s32 %v153, 1
    %v158 = vsel %vm156, %v157, %v153
    %v159 = vadd.s32 %v154, %v158
    %v160 = vadd.s32 %v159, 536870912
    %v161 = vshrl.u32 %v160, 30
    %v162 = vshll.u32 %v161, 30
    %v163 = vsub.s32 %v159, %v162
    %vm164 = vcmp.lt.s32.totalorder %v163, 0
    %v165 = vsub.s32 0, %v163
    %v166 = vsel %vm164, %v165, %v163
    %v167 = vclz %v166
    %v168 = vsub.s32 %v167, 2
    %vm169 = vcmp.gt.s32.totalorder 0, %v168
    %v170 = vsel %vm169, 0, %v168
    %v171 = vsub.s32 32, %v170
    %v172 = vshll.u32 %v163, %v170
    %v173 = vshrl.u32 %v155, %v171
    %v174 = vor.u32 %v172, %v173
    %v175 = vsub.s32 4294967266, %v170
    %v176 = vadd.s32 %v175, 127
    %v177 = vshll.u32 %v176, 23
    %v178 = vor.u32 4788187, %v177
    %v179 = vand.u32 2147483647, %v178
    %v181 = vcvt.s32.f32 %v174
    %v182 = vmul.f32 %v181, %v179
    %v183 = vxor.u32 %v182, 2147483648
    %v184 = vsel %vm101, %v183, %v182
    %v185 = vsub.s32 4, %v161
    %v186 = vsel %vm101, %v185, %v161
    %v187 = vsel %vm100, %v97, %v184
    %v188 = vsel %vm100, 0, %v186
    %v189 = vcosq.f32.pop %v187
    %v190 = vsinq.f32.pop %v187
    %vm191 = vweird.f32 %v97
    %v192 = vadd.s32 %v188, 3
    %v193 = vand.u32 %v192, 3
    %vm194 = vcmp.lt.s32.totalorder %v193, 2
    %vm195 = vcmp.eq.s32.totalorder %v193, 0
    %v196 = vxor.u32 %v190, 2147483648
    %v197 = vsel %vm195, %v189, %v196
    %vm198 = vcmp.eq.s32.totalorder %v193, 2
    %v199 = vxor.u32 %v189, 2147483648
    %v200 = vsel %vm198, %v199, %v190
    %v201 = vsel %vm194, %v197, %v200
    %v202 = vsel %vm191, nan, %v201
    %v203 = vand.u32 2147483647, %v98
    %vm204 = vcmp.le.f32.partialorder %v203, 0.7853982
    %vm205 = vcmp.lt.s32.totalorder %v98, 0
    %v206 = vand.u32 %v98, 2139095040
    %v207 = vshrl.u32 %v206, 23
    %v208 = vsub.s32 %v207, 127
    %v209 = vand.u32 2147483647, %v98
    %v210 = vand.u32 %v209, 8388607
    %v211 = vor.u32 %v210, 8388608
    %v212 = vsub.s32 0, %v211
    %v213 = vadd.s32 %v208, 1
    %vm214 = vcmp.gt.s32.totalorder %v213, 0
    %v215 = vsel %vm214, %v213, 0
    %v216 = vshrl.u32 %v215, 5
    %v217 = vand.u32 %v215, 31
    %v218 = vsub.s32 32, %v217
    %v219 = vshrl.u32 683565275, %v218
    %v220 = vshll.u32 683565275, %v217
    %v221 = vshrl.u32 2475754826, %v218
    %v222 = vor.u32 %v220, %v221
    %v223 = vshll.u32 2475754826, %v217
    %v224 = vshrl.u32 2131351028, %v218
    %v225 = vor.u32 %v223, %v224
    %v226 = vshll.u32 2131351028, %v217
    %v227 = vshrl.u32 2102212464, %v218
    %v228 = vor.u32 %v226, %v227
    %v229 = vshll.u32 2102212464, %v217
    %v230 = vshrl.u32 920167782, %v218
    %v231 = vor.u32 %v229, %v230
    %v232 = vshll.u32 920167782, %v217
    %v233 = vshrl.u32 1326507024, %v218
    %v234 = vor.u32 %v232, %v233
    %vm235 = vcmp.lt.s32.totalorder %v216, 1
    %vm236 = vcmp.lt.s32.totalorder %v216, 2
    %vm237 = vcmp.lt.s32.totalorder %v216, 3
    %vm238 = vcmp.lt.s32.totalorder %v216, 4
    %v239 = vsel %vm235, %v219, %v222
    %v240 = vsel %vm238, %v228, 2102212464
    %v241 = vsel %vm237, %v225, %v240
    %v242 = vsel %vm236, %v239, %v241
    %v243 = vsel %vm235, %v222, %v225
    %v244 = vsel %vm238, %v231, 920167782
    %v245 = vsel %vm237, %v228, %v244
    %v246 = vsel %vm236, %v243, %v245
    %v247 = vsel %vm235, %v225, %v228
    %v248 = vsel %vm238, %v234, 1326507024
    %v249 = vsel %vm237, %v231, %v248
    %v250 = vsel %vm236, %v247, %v249
    %v251 = vshll.u32 %v211, 8
    %v252 = vmul.u32.u64.compose %v251, %v250
    %v253 = vextract.low.u32 %v252
    %v254 = vextract.high.u32 %v252
    %v255 = vmul.u32.u64.compose %v251, %v246
    %v256 = vextract.low.u32 %v255
    %v257 = vextract.high.u32 %v255
    %v258 = vmul.u32 %v251, %v242
    %v259 = vadd.s32 %v254, %v256
    %vm260 = vc.u32 %v254, %v256
    %v261 = vadd.s32 %v257, 1
    %v262 = vsel %vm260, %v261, %v257
    %v263 = vadd.s32 %v258, %v262
    %v264 = vadd.s32 %v263, 536870912
    %v265 = vshrl.u32 %v264, 30
    %v266 = vshll.u32 %v265, 30
    %v267 = vsub.s32 %v263, %v266
    %vm268 = vcmp.lt.s32.totalorder %v267, 0
    %v269 = vsub.s32 0, %v267
    %v270 = vsel %vm268, %v269, %v267
    %v271 = vclz %v270
    %v272 = vsub.s32 %v271, 2
    %vm273 = vcmp.gt.s32.totalorder 0, %v272
    %v274 = vsel %vm273, 0, %v272
    %v275 = vsub.s32 32, %v274
    %v276 = vshll.u32 %v267, %v274
    %v277 = vshrl.u32 %v259, %v275
    %v278 = vor.u32 %v276, %v277
    %v279 = vsub.s32 4294967266, %v274
    %v280 = vadd.s32 %v279, 127
    %v281 = vshll.u32 %v280, 23
    %v282 = vor.u32 4788187, %v281
    %v283 = vand.u32 2147483647, %v282
    %v285 = vcvt.s32.f32 %v278
    %v286 = vmul.f32 %v285, %v283
    %v287 = vxor.u32 %v286, 2147483648
    %v288 = vsel %vm205, %v287, %v286
    %v289 = vsub.s32 4, %v265
    %v290 = vsel %vm205, %v289, %v265
    %v291 = vsel %vm204, %v98, %v288
    %v292 = vsel %vm204, 0, %v290
    %v293 = vcosq.f32.pop %v291
    %v294 = vsinq.f32.pop %v291
    %vm295 = vweird.f32 %v98
    %v296 = vadd.s32 %v292, 3
    %v297 = vand.u32 %v296, 3
    %vm298 = vcmp.lt.s32.totalorder %v297, 2
    %vm299 = vcmp.eq.s32.totalorder %v297, 0
    %v300 = vxor.u32 %v294, 2147483648
    %v301 = vsel %vm299, %v293, %v300
    %vm302 = vcmp.eq.s32.totalorder %v297, 2
    %v303 = vxor.u32 %v293, 2147483648
    %v304 = vsel %vm302, %v303, %v294
    %v305 = vsel %vm298, %v301, %v304
    %v306 = vsel %vm295, nan, %v305
    %309 = vset.pattern.permute.xlu0 0
    %310 = vperm.xlu0 %309, %v202
    %v311 = vpop.permute.xlu0 %310
    %312 = vset.pattern.permute.xlu0 0
    %313 = vperm.xlu0 %312, %v306
    %v314 = vpop.permute.xlu0 %313
    %v315 = vlaneseq
    %v316 = vshrl.u32 %v315, 7
    %v317 = vsub.s32 %v57, %v316
    %v318 = vrot.slane %v311, %v317
    %v319 = vlaneseq
    %v320 = vshrl.u32 %v319, 7
    %v321 = vsub.s32 %v57, %v320
    %v322 = vrot.slane %v314, %v321
    %v323 = vsel %vm66, %v322, %v318
    %s325 = scalar_lea.vmem [#allocation7], 2
    %326 = vst.msk [vmem:[%s325] sm:$0x3] %vm75, %v323
    // Predicated region
    $region18: #{tpu_custom_call.1} parent=1 // pred_check
      _
    $region19: #{tpu_custom_call.1} parent=1 // pred_check_branch
      %328 = sbr.rel (0) target = $region21
    $region20: #{tpu_custom_call.1} parent=1 // pred_region
      %s330 = ssub.s32 64, 64
      %331 = vsyncadd [#allocation4], %s330
      %s332 = sshll.u32 [#allocation7], 4
      %s333 = int_to_ptr.vmem [resolvable:$true] %s332
      %338 = dma.vmem_to_hbm [thread:$0]  %s333, 64, %s2, [#allocation4], 32, 32, 2
    $region21: #{tpu_custom_call.1} parent=1 // pred_fallthru
      _
    // Predicated region
    $region22: #{tpu_custom_call.1} parent=1 // pred_check
      _
    $region23: #{tpu_custom_call.1} parent=1 // pred_check_branch
      %340 = sbr.rel (0) target = $region25
    $region24: #{tpu_custom_call.1} parent=1 // pred_region
      %341 = dma.done [#allocation4], 64
    $region25: #{tpu_custom_call.1} parent=1 // pred_fallthru
      _
    %342 = vsyncpa [#allocation3], 1
    %343 = vsyncpa [#allocation6], 1
    %344 = vsyncpa [#allocation4], 1

</llo_original>
